<compile_context>
chip_gen: v5e
topology: v5e:2x2
jax: 0.10.0
libtpu: 0.0.40
codegen_flags: <defaults>
</compile_context>

<pallas_src>
import jax
import jax.numpy as jnp
from jax.experimental import pallas as pl
from jax.experimental.pallas import tpu as pltpu

B = 4        # batch          (doctest: torch.ones(4, 10))
D_IN = 10    # agent in dim   (nn.Linear(10, 3))
D_OUT = 3    # agent out dim

_VMEM = pl.BlockSpec(memory_space=pltpu.MemorySpace.VMEM)


# ---------------------------------------------------------------------------
# Fused kernel: agent (Linear -> LogSoftmax).
# x_ref : (B, D_IN)          activations
# wb_ref: (D_OUT, D_IN + 1)  PyTorch-layout weight with bias as last column
# out_ref: (B, D_OUT)        log-softmax scores
# Layout: [batch, features]; everything fits in one VMEM block -> no grid.
# ---------------------------------------------------------------------------
def _agent_kernel(x_ref, wb_ref, out_ref):
    x = x_ref[...]                                           # (B, D_IN)
    wb = wb_ref[...]                                         # (D_OUT, D_IN+1)

    # Fold the bias into the contraction: augment x with a ones column so
    # scores[b, o] = sum_k x_aug[b, k] * wb[o, k]  (= x @ W.T + b).
    ones = jnp.ones((x.shape[0], 1), jnp.float32)
    x_aug = jnp.concatenate([x, ones], axis=-1)              # (B, D_IN+1)

    # VPU multiply + XLU lane-axis reduce instead of a heavily padded MXU
    # pass (both units are otherwise idle here).
    scores = jnp.sum(x_aug[:, None, :] * wb[None, :, :], axis=-1)   # (B, D_OUT)

    # Numerically stable log_softmax along the feature axis.
    m = jnp.max(scores, axis=-1, keepdims=True)
    s = scores - m
    lse = jnp.log(jnp.sum(jnp.exp(s), axis=-1, keepdims=True))
    out_ref[...] = s - lse


def _forward(x, wb):
    batch, d_in = x.shape
    d_out = wb.shape[0]
    out = pl.pallas_call(
        _agent_kernel,
        out_shape=jax.ShapeDtypeStruct((batch, d_out), jnp.float32),
        in_specs=[_VMEM, _VMEM],
        out_specs=_VMEM,
        cost_estimate=pl.CostEstimate(
            flops=2 * batch * d_in * d_out,
            transcendentals=batch * (d_out + 1),
            bytes_accessed=4 * (x.size + wb.size + batch * d_out),
        ),
    )(x, wb)
    # SFEDeterministicWrapper adds zero log-probability and zero entropy.
    # These are compile-time constants — no kernel output, no DMA.
    zero = jnp.zeros((1,), jnp.float32)
    return out, zero, zero


# ---------------------------------------------------------------------------
# Module wrapper mirroring SFEDeterministicWrapper.forward
# ---------------------------------------------------------------------------
class SFEDeterministicWrapper:
    """forward(x) -> (agent(x), zeros(1), zeros(1)); agent = Linear+LogSoftmax."""

    def __init__(self, weight, bias):
        # weight: (out_features, in_features) — PyTorch nn.Linear layout.
        # bias:   (out_features,)
        # Fuse into one array once at init: one fewer input DMA every call.
        self.wb = jnp.concatenate(
            [weight.astype(jnp.float32), bias.astype(jnp.float32)[:, None]], axis=1
        )
        self._fwd = jax.jit(_forward)   # no host state, fully jittable

    def forward(self, x):
        return self._fwd(x, self.wb)

    __call__ = forward


# ---------------------------------------------------------------------------
if __name__ == "__main__":
    key = jax.random.PRNGKey(0)
    kw, kb = jax.random.split(key)
    weight = jax.random.normal(kw, (D_OUT, D_IN), jnp.float32) * 0.3   # torch (out, in)
    bias = jax.random.normal(kb, (D_OUT,), jnp.float32) * 0.1

    agent = SFEDeterministicWrapper(weight, bias)

    x = jnp.ones((B, D_IN), jnp.float32)   # doctest input: torch.ones(4, 10)
    sample, log_prob, entropy = agent(x)
    jax.block_until_ready(sample)
    jax.block_until_ready(log_prob)
    jax.block_until_ready(entropy)

    # forward-pass semantics checks (mirrors the PyTorch doctest)
    assert sample.shape == (B, D_OUT)
    assert log_prob.shape == (1,) and float(log_prob[0]) == 0.0
    assert entropy.shape == (1,) and float(entropy[0]) == 0.0
    # numerical check against a pure-JAX reference of Linear + LogSoftmax
    ref_scores = x @ weight.T + bias
    ref = ref_scores - jax.scipy.special.logsumexp(ref_scores, axis=-1, keepdims=True)
    assert jnp.allclose(sample, ref, atol=1e-5)
    # log-softmax sanity: rows exponentiate to a probability distribution
    assert jnp.allclose(jnp.sum(jnp.exp(sample), axis=-1), 1.0, atol=1e-5)

    print("KERNEL_OK")
</pallas_src>

<mosaic_0001>
module attributes {stable_mosaic.version = 11 : i64} {
  func.func @_agent_kernel(%arg0: memref<4x10xf32, #tpu.memory_space<vmem>>, %arg1: memref<3x11xf32, #tpu.memory_space<vmem>>, %arg2: memref<4x3xf32, #tpu.memory_space<vmem>>) attributes {dimension_semantics = [], scalar_prefetch = 0 : i64, scratch_operands = 0 : i64, tpu.core_type = #tpu.core_type<tc>} {
    %c0 = arith.constant 0 : index
    %c0_0 = arith.constant 0 : index
    %0 = vector.load %arg0[%c0, %c0_0] : memref<4x10xf32, #tpu.memory_space<vmem>>, vector<4x10xf32>
    %c0_1 = arith.constant 0 : index
    %c0_2 = arith.constant 0 : index
    %1 = vector.load %arg1[%c0_1, %c0_2] : memref<3x11xf32, #tpu.memory_space<vmem>>, vector<3x11xf32>
    %cst = arith.constant 1.000000e+00 : f32
    %2 = vector.broadcast %cst : f32 to vector<4x1xf32>
    %3 = tpu.concatenate %0, %2 in 1 : vector<4x10xf32>, vector<4x1xf32> -> vector<4x11xf32>
    %4 = vector.shape_cast %3 : vector<4x11xf32> to vector<4x1x11xf32>
    %5 = vector.shape_cast %1 : vector<3x11xf32> to vector<1x3x11xf32>
    %6 = vector.broadcast %4 : vector<4x1x11xf32> to vector<4x3x11xf32>
    %7 = vector.broadcast %5 : vector<1x3x11xf32> to vector<4x3x11xf32>
    %8 = arith.mulf %6, %7 : vector<4x3x11xf32>
    %cst_3 = arith.constant dense<0.000000e+00> : vector<4x3xf32>
    %9 = vector.multi_reduction <add>, %8, %cst_3 [2] : vector<4x3x11xf32> to vector<4x3xf32>
    %cst_4 = arith.constant dense<0xFF800000> : vector<4xf32>
    %10 = vector.multi_reduction <maximumf>, %9, %cst_4 [1] : vector<4x3xf32> to vector<4xf32>
    %11 = vector.shape_cast %10 : vector<4xf32> to vector<4x1xf32>
    %12 = vector.broadcast %11 : vector<4x1xf32> to vector<4x3xf32>
    %13 = arith.subf %9, %12 : vector<4x3xf32>
    %14 = math.exp %13 : vector<4x3xf32>
    %cst_5 = arith.constant dense<0.000000e+00> : vector<4xf32>
    %15 = vector.multi_reduction <add>, %14, %cst_5 [1] : vector<4x3xf32> to vector<4xf32>
    %16 = vector.shape_cast %15 : vector<4xf32> to vector<4x1xf32>
    %17 = math.log %16 : vector<4x1xf32>
    %18 = vector.broadcast %17 : vector<4x1xf32> to vector<4x3xf32>
    %19 = arith.subf %13, %18 : vector<4x3xf32>
    %c0_6 = arith.constant 0 : index
    %c0_7 = arith.constant 0 : index
    %20 = vector.load %arg2[%c0_6, %c0_7] : memref<4x3xf32, #tpu.memory_space<vmem>>, vector<4x3xf32>
    tpu.vector_store %arg2[%c0_6, %c0_7], %19 {strides = array<i32>} : memref<4x3xf32, #tpu.memory_space<vmem>>, vector<4x3xf32>,
    return
  }
}

</mosaic_0001>

<llo_original>
// kernel: _forward.1
$region0: #{_forward.1}
  #allocation0 [shape = 'u32[]', space=smem, size = 0x4, offset = 0x4, fixed_abs, tag = 'smem constant byte address 0x4 - core index']
  #allocation1 [shape = 'u32[72,128]{1,0:T(1,128)}', space=vmem, size = 0x9000, scoped, tag = 'internal scratch']
  %s0 = inlined_call_operand.hbm [shape: f32[4,10], index: 0, kind: input, shape index: {}]
  %s1 = inlined_call_operand.hbm [shape: f32[3,11], index: 1, kind: input, shape index: {}]
  %s2 = inlined_call_operand.hbm [shape: f32[4,3], index: 2, kind: output, shape index: {}]
  %s3 = sld [smem:[#allocation0]]
  $region26: #{_forward.1} parent=0
    _
  %s5 = ssub.s32 1, %s3
  %s6 = scalar_select 0, %s5, %s3
  $region1: #{_forward.1} parent=0
    #allocation2 [shape = 'u8[2048]{0}', space=vmem, size = 0x800, scoped, tag = 'input window, operand 0, single buffered']
    #allocation3 [shape = 's32[1]{0}', space=sflag, size = 0x4, scoped, tag = 'scoped memory for _forward.1']
    #allocation4 [shape = 's32[1]{0}', space=sflag, size = 0x4, scoped, tag = 'scoped memory for _forward.1']
    #allocation5 [shape = 'u8[2048]{0}', space=vmem, size = 0x800, scoped, tag = 'input window, operand 1, single buffered']
    #allocation6 [shape = 's32[1]{0}', space=sflag, size = 0x4, scoped, tag = 'scoped memory for _forward.1']
    #allocation7 [shape = 'u8[2048]{0}', space=vmem, size = 0x800, scoped, tag = 'output window, operand 0, single buffered']
    %7 = vsyncpa [#allocation3], 0
    %8 = vsyncpa [#allocation6], 0
    %9 = vsyncpa [#allocation4], 0
    // Predicated region
    $region2: #{_forward.1} parent=1 // pred_check
      _
    $region3: #{_forward.1} parent=1 // pred_check_branch
      %11 = sbr.rel (0) target = $region5
    $region4: #{_forward.1} parent=1 // pred_region
      %13 = vsyncadd [#allocation3], 0
      %s15 = sshll.u32 %s0, 4
      %s16 = int_to_ptr.hbm [resolvable:$true] %s15
      %s17 = sshll.u32 [#allocation2], 4
      %s18 = int_to_ptr.vmem [resolvable:$true] %s17
      %20 = dma.hbm_to_vmem [thread:$0]  %s16, 64, %s18, [#allocation3]
    $region5: #{_forward.1} parent=1 // pred_fallthru
      _
    // Predicated region
    $region6: #{_forward.1} parent=1 // pred_check
      _
    $region7: #{_forward.1} parent=1 // pred_check_branch
      %22 = sbr.rel (0) target = $region9
    $region8: #{_forward.1} parent=1 // pred_region
      %24 = vsyncadd [#allocation6], 0
      %s26 = sshll.u32 %s1, 4
      %s27 = int_to_ptr.hbm [resolvable:$true] %s26
      %s28 = sshll.u32 [#allocation5], 4
      %s29 = int_to_ptr.vmem [resolvable:$true] %s28
      %31 = dma.hbm_to_vmem [thread:$0]  %s27, 64, %s29, [#allocation6]
    $region9: #{_forward.1} parent=1 // pred_fallthru
      _
    // Predicated region
    $region10: #{_forward.1} parent=1 // pred_check
      _
    $region11: #{_forward.1} parent=1 // pred_check_branch
      %33 = sbr.rel (0) target = $region13
    $region12: #{_forward.1} parent=1 // pred_region
      %35 = dma.done [#allocation3], 64
    $region13: #{_forward.1} parent=1 // pred_fallthru
      _
    // Predicated region
    $region14: #{_forward.1} parent=1 // pred_check
      _
    $region15: #{_forward.1} parent=1 // pred_check_branch
      %37 = sbr.rel (0) target = $region17
    $region16: #{_forward.1} parent=1 // pred_region
      %39 = dma.done [#allocation6], 64
    $region17: #{_forward.1} parent=1 // pred_fallthru
      _
    %v40 = vld [vmem:[#allocation2] sm:$0xf]
    %v41 = vld [vmem:[#allocation5] sm:$0x7]
    %vm42 = vcmask 80896
    %v43 = vsel %vm42, %v40, 1.0
    %v45 = vrot.slane %v43, 1
    %v46 = vrot.slane %v43, 2
    %v47 = vrot.slane %v43, 3
    %v48 = vperm.slane %v43, 0
    %v49 = vperm.slane %v45, 0
    %v50 = vperm.slane %v46, 0
    %v51 = vperm.slane %v47, 0
    %v56 = vmul.f32 %v48, %v41
    %v57 = vmul.f32 %v49, %v41
    %v58 = vmul.f32 %v50, %v41
    %v59 = vmul.f32 %v51, %v41
    %vm60 = vcmask 83968
    %v61 = vsel %vm60, %v56, 0.0
    %62 = vadd.xlane.f32.xlu0 %v61
    %v63 = vpop.xlane.xlu0 %62
    %v64 = vsel %vm60, %v57, 0.0
    %65 = vadd.xlane.f32.xlu0 %v64
    %v66 = vpop.xlane.xlu0 %65
    %v67 = vsel %vm60, %v58, 0.0
    %68 = vadd.xlane.f32.xlu0 %v67
    %v69 = vpop.xlane.xlu0 %68
    %v70 = vsel %vm60, %v59, 0.0
    %71 = vadd.xlane.f32.xlu0 %v70
    %v72 = vpop.xlane.xlu0 %71
    %v77 = vlaneseq
    %v78 = vand.u32 %v77, 127
    %v79 = vperm.slane %v63, %v78
    %v80 = vperm.slane %v66, %v78
    %v81 = vperm.slane %v69, %v78
    %v82 = vperm.slane %v72, %v78
    %vm83 = vcmask 1041409
    %v84 = vsel %vm83, %v80, %v79
    %vm85 = vcmask 1042434
    %v86 = vsel %vm85, %v81, %v84
    %vm87 = vcmask 1043459
    %v88 = vsel %vm87, %v82, %v86
    %vm90 = vcmask 19456
    %v91 = vsel %vm90, %v88, -inf
    %92 = vmax.xlane.f32.xlu0 %v91
    %v93 = vpop.xlane.xlu0 %92
    %v95 = vperm.slane %v93, 0
    %v96 = vperm.slane %v93, 1
    %v97 = vperm.slane %v93, 2
    %v98 = vperm.slane %v93, 3
    %v103 = vsub.f32 %v63, %v95
    %v104 = vsub.f32 %v66, %v96
    %v105 = vsub.f32 %v69, %v97
    %v106 = vsub.f32 %v72, %v98
    %v107 = vmul.f32 %v103, 1.442695
    %v108 = vpow.pop %v107
    %v109 = vmul.f32 %v104, 1.442695
    %v110 = vpow.pop %v109
    %v111 = vmul.f32 %v105, 1.442695
    %v112 = vpow.pop %v111
    %v113 = vmul.f32 %v106, 1.442695
    %v114 = vpow.pop %v113
    %119 = vset.pattern.permute.xlu0 0
    %120 = vperm.xlu0 %119, %v108
    %v121 = vpop.permute.xlu0 %120
    %122 = vset.pattern.permute.xlu0 0
    %123 = vperm.xlu0 %122, %v110
    %v124 = vpop.permute.xlu0 %123
    %125 = vset.pattern.permute.xlu0 0
    %126 = vperm.xlu0 %125, %v112
    %v127 = vpop.permute.xlu0 %126
    %128 = vset.pattern.permute.xlu0 0
    %129 = vperm.xlu0 %128, %v114
    %v130 = vpop.permute.xlu0 %129
    %v131 = vperm.slane %v121, %v78
    %v132 = vperm.slane %v124, %v78
    %v133 = vperm.slane %v127, %v78
    %v134 = vperm.slane %v130, %v78
    %v135 = vsel %vm83, %v132, %v131
    %v136 = vsel %vm85, %v133, %v135
    %v137 = vsel %vm87, %v134, %v136
    %v139 = vsel %vm90, %v137, 0.0
    %140 = vadd.xlane.f32.xlu0 %v139
    %v141 = vpop.xlane.xlu0 %140
    %v142 = vlog2.pop %v141
    %v143 = vmul.f32 %v142, 0.6931472
    %v145 = vperm.slane %v143, 0
    %v146 = vperm.slane %v143, 1
    %v147 = vperm.slane %v143, 2
    %v148 = vperm.slane %v143, 3
    %v153 = vsub.f32 %v103, %v145
    %v154 = vsub.f32 %v104, %v146
    %v155 = vsub.f32 %v105, %v147
    %v156 = vsub.f32 %v106, %v148
    %161 = vset.pattern.permute.xlu0 0
    %162 = vperm.xlu0 %161, %v153
    %v163 = vpop.permute.xlu0 %162
    %164 = vset.pattern.permute.xlu0 0
    %165 = vperm.xlu0 %164, %v154
    %v166 = vpop.permute.xlu0 %165
    %167 = vset.pattern.permute.xlu0 0
    %168 = vperm.xlu0 %167, %v155
    %v169 = vpop.permute.xlu0 %168
    %170 = vset.pattern.permute.xlu0 0
    %171 = vperm.xlu0 %170, %v156
    %v172 = vpop.permute.xlu0 %171
    %v173 = vperm.slane %v163, %v78
    %v174 = vperm.slane %v166, %v78
    %v175 = vperm.slane %v169, %v78
    %v176 = vperm.slane %v172, %v78
    %v177 = vsel %vm83, %v174, %v173
    %v178 = vsel %vm85, %v175, %v177
    %v179 = vsel %vm87, %v176, %v178
    %181 = vst.msk [vmem:[#allocation7] sm:$0xf] %vm90, %v179
    // Predicated region
    $region18: #{_forward.1} parent=1 // pred_check
      _
    $region19: #{_forward.1} parent=1 // pred_check_branch
      %183 = sbr.rel (0) target = $region21
    $region20: #{_forward.1} parent=1 // pred_region
      %185 = vsyncadd [#allocation4], 0
      %s187 = sshll.u32 [#allocation7], 4
      %s188 = int_to_ptr.vmem [resolvable:$true] %s187
      %s189 = sshll.u32 %s2, 4
      %s190 = int_to_ptr.hbm [resolvable:$true] %s189
      %192 = dma.vmem_to_hbm [thread:$0]  %s188, 64, %s190, [#allocation4]
    $region21: #{_forward.1} parent=1 // pred_fallthru
      _
    // Predicated region
    $region22: #{_forward.1} parent=1 // pred_check
      _
    $region23: #{_forward.1} parent=1 // pred_check_branch
      %194 = sbr.rel (0) target = $region25
    $region24: #{_forward.1} parent=1 // pred_region
      %196 = dma.done [#allocation4], 64
    $region25: #{_forward.1} parent=1 // pred_fallthru
      _
    %197 = vsyncpa [#allocation3], 1
    %198 = vsyncpa [#allocation6], 1
    %199 = vsyncpa [#allocation4], 1

</llo_original>
